<compile_context>
chip_gen: v7x
topology: tpu7x:2x2x1
jax: 0.10.0
libtpu: 0.0.40
codegen_flags: <defaults>
</compile_context>

<pallas_src>
import functools
import math

import jax
import jax.numpy as jnp
import numpy as np
from jax import lax
from jax.experimental import pallas as pl
from jax.experimental.pallas import tpu as pltpu


# ----------------------------- generation-aware knobs -----------------------------

def _vmem_budget_and_tiles():
    """VMEM limit and tile preferences derived from the actual part (v5e/v6e 128 MiB, v7x 64 MiB)."""
    cap = 64 * 1024 * 1024  # conservative fallback (v7x-sized)
    try:
        cap_q = int(pltpu.get_tpu_info().vmem_capacity_bytes)
        if cap_q >= 32 * 1024 * 1024:
            cap = cap_q
    except Exception:
        pass
    vmem_limit = (cap // 8) * 7          # leave ~1/8 headroom for Mosaic internal scratch
    big = cap >= 96 * 1024 * 1024        # v5e / v6e class parts
    tq_pref = 256 if big else 128        # attention q-tile rows
    tm_pref = 512 if big else 256        # dense M-tile rows
    return vmem_limit, tq_pref, tm_pref


_VMEM_LIMIT, _TQ_PREF, _TM_PREF = _vmem_budget_and_tiles()


def _pick_tile(dim, pref, align):
    """Largest multiple of `align` <= pref that divides dim; bounded full-dim fallback."""
    if dim <= pref:
        return dim
    t = (pref // align) * align
    while t >= align:
        if dim % t == 0:
            return t
        t -= align
    # TODO(synk): pad awkward dims instead of falling back to the full extent.
    if dim > 8 * pref:
        raise ValueError(f"no aligned tile <= {pref} divides {dim}; pad the input instead")
    return dim


# ----------------------------- dense (Linear) kernels -----------------------------

def _dense_kernel_f32(x_ref, w_ref, b_ref, o_ref):
    # x: (1, tm, tk)  w: (1, tk, tn) bf16  b: (1, 1, tn) f32  o: (1, tm, tn) f32
    # f32 output: accumulate directly into the resident output block (no scratch).
    @pl.when(pl.program_id(3) == 0)
    def _():
        o_ref[0] = jnp.broadcast_to(b_ref[0], o_ref.shape[1:]).astype(jnp.float32)

    o_ref[0] += jnp.dot(x_ref[0].astype(jnp.bfloat16), w_ref[0],
                        preferred_element_type=jnp.float32)


def _dense_kernel_lowp(x_ref, w_ref, b_ref, o_ref, acc_ref):
    # Low-precision (bf16) output: keep an f32 VMEM accumulator across the k axis.
    @pl.when(pl.program_id(3) == 0)
    def _():
        acc_ref[...] = jnp.zeros_like(acc_ref)

    acc_ref[...] += jnp.dot(x_ref[0].astype(jnp.bfloat16), w_ref[0],
                            preferred_element_type=jnp.float32)

    @pl.when(pl.program_id(3) == pl.num_programs(3) - 1)
    def _():
        o_ref[0] = (acc_ref[...] + b_ref[0]).astype(o_ref.dtype)


def _stacked_dense(x, wt, b, out_dtype, *, tm_pref=None, tn_pref=512, tk_pref=512):
    """x: (P, M, K); wt: (P, K, N) bf16 pre-transposed weights; b: (P, 1, N) f32 -> (P, M, N)."""
    if tm_pref is None:
        tm_pref = _TM_PREF
    p_, m, kdim = x.shape
    n = wt.shape[-1]
    tm = _pick_tile(m, tm_pref, 16)     # 16-row alignment: bf16 sublane tile
    tn = _pick_tile(n, tn_pref, 128)
    tk = _pick_tile(kdim, tk_pref, 128)
    grid = (p_, m // tm, n // tn, kdim // tk)

    f32_out = out_dtype == jnp.float32  # dtype objects passed literally below
    kernel = _dense_kernel_f32 if f32_out else _dense_kernel_lowp
    scratch = [] if f32_out else [pltpu.VMEM((tm, tn), jnp.float32)]

    return pl.pallas_call(
        kernel,
        out_shape=jax.ShapeDtypeStruct((p_, m, n), out_dtype),
        grid=grid,
        in_specs=[
            pl.BlockSpec((1, tm, tk), lambda p, i, j, k: (p, i, k)),
            pl.BlockSpec((1, tk, tn), lambda p, i, j, k: (p, k, j)),
            pl.BlockSpec((1, 1, tn), lambda p, i, j, k: (p, 0, j)),
        ],
        out_specs=pl.BlockSpec((1, tm, tn), lambda p, i, j, k: (p, i, j)),
        scratch_shapes=scratch,
        compiler_params=pltpu.CompilerParams(
            dimension_semantics=("parallel", "parallel", "parallel", "arbitrary"),
            vmem_limit_bytes=_VMEM_LIMIT,
        ),
    )(x, wt, b)


# ----------------------------- attention kernel -----------------------------

def _attention_kernel(q_ref, k_ref, v_ref, wc_ref, bc_ref, ctx_ref, cmap_ref,
                      kh_ref, vh_ref, *, h, d_k):
    # q_ref   : (1, tq, d_model) bf16   (already scaled by 1/sqrt(d_k) via the Q weights)
    # k_ref   : (1, S,  d_model) bf16   v_ref: (1, S, d_model) bf16
    # wc_ref  : (h,) f32 SMEM           bc_ref: (1,) f32 SMEM   (compress Linear(h,1) params)
    # ctx_ref : (1, tq, d_model) bf16   heads merged on the lane axis
    # cmap_ref: (1, tq, S) f32          Linear(h,1)-compressed attention map (fused over heads)
    # kh_ref/vh_ref: (h, S, d_k) bf16 VMEM scratch — head-major repack, refreshed per batch
    tq = q_ref.shape[1]
    s = k_ref.shape[1]

    # K/V blocks only change with the batch grid axis: repack them head-major ONCE per batch so
    # the per-head lane-offset slice/relayout is amortized over all q tiles of that batch.
    @pl.when(pl.program_id(1) == 0)
    def _():
        for hh in range(h):
            lo = hh * d_k
            kh_ref[hh] = k_ref[0, :, lo:lo + d_k]
            vh_ref[hh] = v_ref[0, :, lo:lo + d_k]

    # Initialize the compressed map with the Linear(h,1) bias, then accumulate heads into it.
    cmap_ref[0] = jnp.full((tq, s), bc_ref[0], jnp.float32)

    for hh in range(h):  # static unroll over heads; each head writes its outputs immediately
        lo = hh * d_k
        qh = q_ref[0, :, lo:lo + d_k]                       # (tq, d_k) bf16
        kh = kh_ref[hh]                                     # (S,  d_k) bf16, contiguous
        # Contract last dims directly (no K transpose materialized); f32 accumulation on MXU.
        scores = lax.dot_general(qh, kh, (((1,), (1,)), ((), ())),
                                 preferred_element_type=jnp.float32)   # (tq, S) f32
        m = jnp.max(scores, axis=-1, keepdims=True)
        e = jnp.exp(scores - m)                             # f32 (EUP)
        l = jnp.sum(e, axis=-1, keepdims=True)
        p = e * (1.0 / l)                                   # exact softmax normalization (f32)
        cmap_ref[0] += wc_ref[hh] * p                       # fused head-compression Linear(h, 1)
        # Per-head PV matmul stored straight into the packed context slot (no concatenate).
        ctx_ref[0, :, lo:lo + d_k] = jnp.dot(
            p.astype(jnp.bfloat16), vh_ref[hh],
            preferred_element_type=jnp.float32).astype(ctx_ref.dtype)


def _attention_compressed(qkv, wc, bc, *, h, bsz, s, d_model, fused_layout, tq_pref=None):
    """Scaled-dot-product attention over all heads with the Linear(h,1) map compression fused.

    qkv is either (B, S, 3*d_model) (fused single projection; self-attention) or
    (3*B, S, d_model) (stacked projections; cross-attention).  Returns
    ctx (B, S, d_model) bf16 and the compressed attention map (B, S, S) f32."""
    if tq_pref is None:
        tq_pref = _TQ_PREF
    d_k = d_model // h
    tq = _pick_tile(s, tq_pref, 16)
    grid = (bsz, s // tq)

    if fused_layout:
        # (B, S, 3*d_model): q/k/v selected by column-offset block index on the last axis.
        q_spec = pl.BlockSpec((1, tq, d_model), lambda b, qi: (b, qi, 0))
        k_spec = pl.BlockSpec((1, s, d_model), lambda b, qi: (b, 0, 1))
        v_spec = pl.BlockSpec((1, s, d_model), lambda b, qi: (b, 0, 2))
    else:
        # (3*B, S, d_model): leading block index selects projection, then batch.
        q_spec = pl.BlockSpec((1, tq, d_model), lambda b, qi: (b, qi, 0))
        k_spec = pl.BlockSpec((1, s, d_model), lambda b, qi, nb=bsz: (nb + b, 0, 0))
        v_spec = pl.BlockSpec((1, s, d_model), lambda b, qi, nb=bsz: (2 * nb + b, 0, 0))

    kernel = functools.partial(_attention_kernel, h=h, d_k=d_k)
    ctx, cmap = pl.pallas_call(
        kernel,
        out_shape=(
            jax.ShapeDtypeStruct((bsz, s, d_model), jnp.bfloat16),
            jax.ShapeDtypeStruct((bsz, s, s), jnp.float32),
        ),
        grid=grid,
        in_specs=[
            q_spec, k_spec, v_spec,
            pl.BlockSpec(memory_space=pltpu.MemorySpace.SMEM),
            pl.BlockSpec(memory_space=pltpu.MemorySpace.SMEM),
        ],
        out_specs=(
            pl.BlockSpec((1, tq, d_model), lambda b, qi: (b, qi, 0)),
            pl.BlockSpec((1, tq, s), lambda b, qi: (b, qi, 0)),
        ),
        scratch_shapes=[
            pltpu.VMEM((h, s, d_k), jnp.bfloat16),   # head-major K (per-batch resident)
            pltpu.VMEM((h, s, d_k), jnp.bfloat16),   # head-major V
        ],
        compiler_params=pltpu.CompilerParams(
            # q-tile axis must stay "arbitrary": later q tiles reuse the K/V scratch repacked
            # at qi == 0.  Batch axis is "parallel" so v7x's two TensorCores split batches.
            dimension_semantics=("parallel", "arbitrary"),
            vmem_limit_bytes=_VMEM_LIMIT,
        ),
    )(qkv, qkv, qkv, wc, bc)
    return ctx, cmap


# ----------------------------- module forward -----------------------------

def multi_headed_attention(query, key, value, params, h):
    """Forward matching MultiHeadedAttention(h, d_model, compress_attention=True).eval()."""
    bsz, s, d_model = query.shape
    d_k = d_model // h
    scale = 1.0 / math.sqrt(d_k)

    # Fold the 1/sqrt(d_k) attention scaling into the Q projection (exact, zero runtime cost).
    wq_t = (params["wq"] * scale).T
    bq = params["bq"] * scale

    self_attn = (query is key) and (key is value)
    if self_attn:
        # Single fused projection x @ [Wq^T | Wk^T | Wv^T]: no stacked-activation HBM copy and
        # a 3x wider N per MXU tile.
        w_qkv = jnp.concatenate([wq_t, params["wk"].T, params["wv"].T], axis=1)
        b_qkv = jnp.concatenate([bq, params["bk"], params["bv"]])
        qkv = _stacked_dense(
            query.reshape(1, bsz * s, d_model),                      # f32, cast in-kernel
            w_qkv.astype(jnp.bfloat16)[None],
            b_qkv.astype(jnp.float32).reshape(1, 1, 3 * d_model),
            jnp.bfloat16,
        ).reshape(bsz, s, 3 * d_model)
        fused_layout = True
    else:
        # Cross attention: stacked (3, M, K) @ (3, K, N) projection.  The extra activation copy
        # through HBM is done in bf16 to halve it.
        x_stack = jnp.stack([query, key, value], axis=0).reshape(3, bsz * s, d_model)
        x_stack = x_stack.astype(jnp.bfloat16)
        w_stack = jnp.stack([wq_t, params["wk"].T, params["wv"].T], axis=0).astype(jnp.bfloat16)
        b_stack = jnp.stack([bq, params["bk"], params["bv"]], axis=0).astype(jnp.float32)
        qkv = _stacked_dense(
            x_stack, w_stack, b_stack.reshape(3, 1, d_model), jnp.bfloat16,
        ).reshape(3 * bsz, s, d_model)
        fused_layout = False

    wc = params["wc"].reshape(-1).astype(jnp.float32)   # (h,)  PyTorch Linear(h,1).weight is (1,h)
    bc = params["bc"].reshape(-1).astype(jnp.float32)   # (1,)
    ctx, cmap = _attention_compressed(qkv, wc, bc, h=h, bsz=bsz, s=s, d_model=d_model,
                                      fused_layout=fused_layout)

    # Output projection; ctx is already in (B, S, h*d_k) layout -> flatten is free.
    out = _stacked_dense(
        ctx.reshape(1, bsz * s, d_model),
        params["wo"].T.astype(jnp.bfloat16)[None],
        params["bo"].astype(jnp.float32).reshape(1, 1, d_model),
        jnp.float32,
    ).reshape(bsz, s, d_model)

    attn_map = cmap.reshape(bsz, 1, s, s)  # free reshape
    return out, attn_map


# ----------------------------- reference (pure JAX, f32) -----------------------------

def _reference(query, key, value, params, h):
    bsz, s, d_model = query.shape
    d_k = d_model // h

    def lin(x, w, b):
        return x @ w.T + b

    def split(x):
        return x.reshape(bsz, s, h, d_k).transpose(0, 2, 1, 3)

    q = split(lin(query, params["wq"], params["bq"]))
    k = split(lin(key, params["wk"], params["bk"]))
    v = split(lin(value, params["wv"], params["bv"]))
    scores = jnp.einsum("bhqd,bhkd->bhqk", q, k) / math.sqrt(d_k)
    p = jax.nn.softmax(scores, axis=-1)
    x = jnp.einsum("bhqk,bhkd->bhqd", p, v)
    x = x.transpose(0, 2, 1, 3).reshape(bsz, s, d_model)
    out = lin(x, params["wo"], params["bo"])
    amap = p.transpose(0, 2, 3, 1) @ params["wc"].reshape(h, 1) + params["bc"]
    amap = amap.transpose(0, 3, 1, 2)
    return out, amap


# ----------------------------- main -----------------------------

if __name__ == "__main__":
    B, S, H, D_MODEL = 2, 16, 4, 128   # d_model kept lane-aligned (128) so blocks stay dense
    key0 = jax.random.PRNGKey(0)
    ks = jax.random.split(key0, 16)

    wscale = 1.0 / math.sqrt(D_MODEL)
    params = {
        "wq": jax.random.normal(ks[0], (D_MODEL, D_MODEL), jnp.float32) * wscale,
        "bq": jax.random.normal(ks[1], (D_MODEL,), jnp.float32) * 0.01,
        "wk": jax.random.normal(ks[2], (D_MODEL, D_MODEL), jnp.float32) * wscale,
        "bk": jax.random.normal(ks[3], (D_MODEL,), jnp.float32) * 0.01,
        "wv": jax.random.normal(ks[4], (D_MODEL, D_MODEL), jnp.float32) * wscale,
        "bv": jax.random.normal(ks[5], (D_MODEL,), jnp.float32) * 0.01,
        "wo": jax.random.normal(ks[6], (D_MODEL, D_MODEL), jnp.float32) * wscale,
        "bo": jax.random.normal(ks[7], (D_MODEL,), jnp.float32) * 0.01,
        "wc": jax.random.normal(ks[8], (1, H), jnp.float32) * (1.0 / math.sqrt(H)),
        "bc": jax.random.normal(ks[9], (1,), jnp.float32) * 0.01,
    }

    query = jax.random.normal(ks[10], (B, S, D_MODEL), jnp.float32)
    key_in = jax.random.normal(ks[11], (B, S, D_MODEL), jnp.float32)
    value = jax.random.normal(ks[12], (B, S, D_MODEL), jnp.float32)

    # Tolerances account for bf16 MXU operands / bf16 q,k,v,ctx storage (softmax stays f32).
    TOL = dict(rtol=5e-2, atol=5e-2)

    # Cross-attention path (stacked bf16 projection).
    out, attn_map = multi_headed_attention(query, key_in, value, params, H)
    out = jax.block_until_ready(out)
    attn_map = jax.block_until_ready(attn_map)
    ref_out, ref_map = _reference(query, key_in, value, params, H)
    np.testing.assert_allclose(np.asarray(out), np.asarray(ref_out), **TOL)
    np.testing.assert_allclose(np.asarray(attn_map), np.asarray(ref_map), **TOL)
    assert out.shape == (B, S, D_MODEL) and attn_map.shape == (B, 1, S, S)

    # Self-attention path (single fused W_qkv projection, no activation stack copy).
    out_sa, map_sa = multi_headed_attention(query, query, query, params, H)
    out_sa = jax.block_until_ready(out_sa)
    map_sa = jax.block_until_ready(map_sa)
    ref_out_sa, ref_map_sa = _reference(query, query, query, params, H)
    np.testing.assert_allclose(np.asarray(out_sa), np.asarray(ref_out_sa), **TOL)
    np.testing.assert_allclose(np.asarray(map_sa), np.asarray(ref_map_sa), **TOL)

    print("KERNEL_OK")
</pallas_src>

<mosaic_0001>
module attributes {stable_mosaic.version = 11 : i64} {
  func.func @_dense_kernel_lowp(%arg0: i32, %arg1: i32, %arg2: i32, %arg3: i32, %arg4: memref<1x32x128xbf16, #tpu.memory_space<vmem>>, %arg5: memref<1x128x128xbf16, #tpu.memory_space<vmem>>, %arg6: memref<1x1x128xf32, #tpu.memory_space<vmem>>, %arg7: memref<1x32x128xbf16, #tpu.memory_space<vmem>>, %arg8: memref<32x128xf32, #tpu.memory_space<vmem>>) attributes {dimension_semantics = [#tpu.dimension_semantics<parallel>, #tpu.dimension_semantics<parallel>, #tpu.dimension_semantics<parallel>, #tpu.dimension_semantics<arbitrary>], iteration_bounds = array<i64: 3, 1, 1, 1>, scalar_prefetch = 0 : i64, scratch_operands = 1 : i64, tpu.core_type = #tpu.core_type<tc>, window_params = [{transform_indices = @transform_0, window_bounds = array<i64: 1, 32, 128>}, {transform_indices = @transform_1, window_bounds = array<i64: 1, 128, 128>}, {transform_indices = @transform_2, window_bounds = array<i64: 1, 1, 128>}, {transform_indices = @transform_3, window_bounds = array<i64: 1, 32, 128>}]} {
    %c0_i32 = arith.constant 0 : i32
    %0 = arith.cmpi eq, %arg3, %c0_i32 : i32
    %1 = arith.extui %0 : i1 to i32
    %c0_i32_0 = arith.constant 0 : i32
    %2 = arith.cmpi ne, %1, %c0_i32_0 : i32
    scf.if %2 {
      %cst_12 = arith.constant 0.000000e+00 : f32
      %14 = vector.broadcast %cst_12 : f32 to vector<32x128xf32>
      %c0_13 = arith.constant 0 : index
      %c0_14 = arith.constant 0 : index
      %15 = vector.load %arg8[%c0_13, %c0_14] : memref<32x128xf32, #tpu.memory_space<vmem>>, vector<32x128xf32>
      tpu.vector_store %arg8[%c0_13, %c0_14], %14 {strides = array<i32>} : memref<32x128xf32, #tpu.memory_space<vmem>>, vector<32x128xf32>,
    } else {
    }
    %c0 = arith.constant 0 : index
    %c0_1 = arith.constant 0 : index
    %3 = vector.load %arg8[%c0, %c0_1] : memref<32x128xf32, #tpu.memory_space<vmem>>, vector<32x128xf32>
    %c0_2 = arith.constant 0 : index
    %c0_3 = arith.constant 0 : index
    %c0_4 = arith.constant 0 : index
    %4 = vector.load %arg4[%c0_2, %c0_3, %c0_4] : memref<1x32x128xbf16, #tpu.memory_space<vmem>>, vector<1x32x128xbf16>
    %5 = vector.shape_cast %4 : vector<1x32x128xbf16> to vector<32x128xbf16>
    %c0_5 = arith.constant 0 : index
    %c0_6 = arith.constant 0 : index
    %c0_7 = arith.constant 0 : index
    %6 = vector.load %arg5[%c0_5, %c0_6, %c0_7] : memref<1x128x128xbf16, #tpu.memory_space<vmem>>, vector<1x128x128xbf16>
    %7 = vector.shape_cast %6 : vector<1x128x128xbf16> to vector<128x128xbf16>
    %cst = arith.constant dense<0.000000e+00> : vector<32x128xf32>
    %8 = tpu.matmul %5, %7, %cst {dimension_numbers = #tpu.dot_dimension_numbers<[1], [0], [0], [1], [0, 0, 1, 1], [], []>} : vector<32x128xbf16>, vector<128x128xbf16>, vector<32x128xf32> -> vector<32x128xf32>
    %9 = arith.addf %3, %8 : vector<32x128xf32>
    %c0_8 = arith.constant 0 : index
    %c0_9 = arith.constant 0 : index
    %10 = vector.load %arg8[%c0_8, %c0_9] : memref<32x128xf32, #tpu.memory_space<vmem>>, vector<32x128xf32>
    tpu.vector_store %arg8[%c0_8, %c0_9], %9 {strides = array<i32>} : memref<32x128xf32, #tpu.memory_space<vmem>>, vector<32x128xf32>,
    %c0_i32_10 = arith.constant 0 : i32
    %11 = arith.cmpi eq, %arg3, %c0_i32_10 : i32
    %12 = arith.extui %11 : i1 to i32
    %c0_i32_11 = arith.constant 0 : i32
    %13 = arith.cmpi ne, %12, %c0_i32_11 : i32
    scf.if %13 {
      %c0_12 = arith.constant 0 : index
      %c0_13 = arith.constant 0 : index
      %14 = vector.load %arg8[%c0_12, %c0_13] : memref<32x128xf32, #tpu.memory_space<vmem>>, vector<32x128xf32>
      %c0_14 = arith.constant 0 : index
      %c0_15 = arith.constant 0 : index
      %c0_16 = arith.constant 0 : index
      %15 = vector.load %arg6[%c0_14, %c0_15, %c0_16] : memref<1x1x128xf32, #tpu.memory_space<vmem>>, vector<1x1x128xf32>
      %16 = vector.shape_cast %15 : vector<1x1x128xf32> to vector<1x128xf32>
      %17 = vector.broadcast %16 : vector<1x128xf32> to vector<32x128xf32>
      %18 = arith.addf %14, %17 : vector<32x128xf32>
      %19 = arith.truncf %18 : vector<32x128xf32> to vector<32x128xbf16>
      %c0_17 = arith.constant 0 : index
      %c0_18 = arith.constant 0 : index
      %c0_19 = arith.constant 0 : index
      %20 = vector.load %arg7[%c0_17, %c0_18, %c0_19] : memref<1x32x128xbf16, #tpu.memory_space<vmem>>, vector<1x32x128xbf16>
      %21 = vector.shape_cast %20 : vector<1x32x128xbf16> to vector<32x128xbf16>
      %22 = vector.shape_cast %19 : vector<32x128xbf16> to vector<1x32x128xbf16>
      tpu.vector_store %arg7[%c0_17, %c0_18, %c0_19], %22 {strides = array<i32>} : memref<1x32x128xbf16, #tpu.memory_space<vmem>>, vector<1x32x128xbf16>,
    } else {
    }
    return
  }
  func.func @transform_0(%arg0: i32, %arg1: i32, %arg2: i32, %arg3: i32) -> (i32, i32, i32) {
    %c0_i32 = arith.constant 0 : i32
    return %arg0, %arg1, %arg3 : i32, i32, i32
  }
  func.func @transform_1(%arg0: i32, %arg1: i32, %arg2: i32, %arg3: i32) -> (i32, i32, i32) {
    %c0_i32 = arith.constant 0 : i32
    return %arg0, %arg3, %arg2 : i32, i32, i32
  }
  func.func @transform_2(%arg0: i32, %arg1: i32, %arg2: i32, %arg3: i32) -> (i32, i32, i32) {
    %c0_i32 = arith.constant 0 : i32
    %c0_i32_0 = arith.constant 0 : i32
    return %arg0, %c0_i32, %arg2 : i32, i32, i32
  }
  func.func @transform_3(%arg0: i32, %arg1: i32, %arg2: i32, %arg3: i32) -> (i32, i32, i32) {
    %c0_i32 = arith.constant 0 : i32
    return %arg0, %arg1, %arg2 : i32, i32, i32
  }
}

</mosaic_0001>

<llo_original>
// kernel: tpu_custom_call.1
$region0: #{tpu_custom_call.1}
  #allocation0 [shape = 'u32[]', space=smem, size = 0x4, offset = 0x4, fixed_abs, tag = 'smem constant byte address 0x4 - core index']
  #allocation1 [shape = 'u32[144,128]{1,0:T(1,128)}', space=vmem, size = 0x12000, scoped, tag = 'internal scratch']
  #allocation2 [shape = 'f32[32,128]{1,0:T(8,128)}', space=vmem, size = 0x4000, scoped, tag = 'scratch operand']
  %s0 = inlined_call_operand.hbm [shape: bf16[3,32,128], index: 0, kind: input, shape index: {}]
  %s1 = inlined_call_operand.hbm [shape: bf16[3,128,128], index: 1, kind: input, shape index: {}]
  %s2 = inlined_call_operand.vmem [shape: f32[3,1,128], index: 2, kind: input, shape index: {}]
  %s3 = inlined_call_operand.hbm [shape: bf16[3,32,128], index: 3, kind: output, shape index: {}]
  %s4 = sld [smem:[#allocation0]]
  $region61: #{tpu_custom_call.1} parent=0
    _
  %s6 = ssub.s32 1, %s4
  %s7 = scalar_select 0, %s6, %s4
  $region1: #{tpu_custom_call.1} parent=0
    #allocation3 [shape = 'u8[16384]{0}', space=vmem, size = 0x4000, scoped, tag = 'input window, operand 0']
    #allocation4 [shape = 's32[2]{0}', space=sflag, size = 0x8, scoped, tag = 'scoped memory for tpu_custom_call.1']
    #allocation5 [shape = 's32[2]{0}', space=sflag, size = 0x8, scoped, tag = 'scoped memory for tpu_custom_call.1']
    #allocation6 [shape = 'u8[65536]{0}', space=vmem, size = 0x10000, scoped, tag = 'input window, operand 1']
    #allocation7 [shape = 's32[2]{0}', space=sflag, size = 0x8, scoped, tag = 'scoped memory for tpu_custom_call.1']
    #allocation8 [shape = 'u8[16384]{0}', space=vmem, size = 0x4000, scoped, tag = 'output window, operand 0']
    %8 = vsyncpa [#allocation4], 0
    %s9 = scalar_lea.sflag [#allocation4], 1
    %10 = vsyncpa %s9, 0
    %11 = vsyncpa [#allocation7], 0
    %s12 = scalar_lea.sflag [#allocation7], 1
    %13 = vsyncpa %s12, 0
    %14 = vsyncpa [#allocation5], 0
    %s15 = scalar_lea.sflag [#allocation5], 1
    %16 = vsyncpa %s15, 0
    loop: start=0, step=1, limit=5
    $region2: #{tpu_custom_call.1} parent=1 // loop_pre_header
      _
    $region3: #{tpu_custom_call.1} parent=1 // loop_header
      %s18 = sphi 0, %s22
      %p19 = scmp.ge.s32.totalorder %s18, 5
      %s25 = sphi 0, %s51
      %s26 = sphi 0, %s47
      %s27 = sphi 0, %s43
      %s28 = sphi 0, %s39
      %s29 = sphi 0, %s25
      %s30 = sphi 0, %s26
      %s31 = sphi 0, %s27
      %s32 = sphi 0, %s28
      %s33 = sphi 0, %s29
      %s34 = sphi 0, %s30
      %s35 = sphi 0, %s31
      %s36 = sphi 0, %s32
      %s58 = sphi 0, %s60
      %s61 = sphi 0, %s58
      %s62 = sphi 0, %s61
      %s78 = sphi 0, %s62
      %s88 = sphi 0, %s90
      %s91 = sphi 0, %s88
      %s92 = sphi 0, %s91
      %s108 = sphi 0, %s92
      %s116 = sphi 0, %s118
      %s119 = sphi 0, %s116
      %s120 = sphi 0, %s119
      %s136 = sphi 0, %s120
      %s146 = sphi 0, %s148
      %s149 = sphi 0, %s146
      %s150 = sphi 0, %s149
      %s166 = sphi 0, %s150
    $region4: #{tpu_custom_call.1} parent=1 // loop_header_branch
      %21 = sbr.rel (%p19) target = $region8
    $region5: #{tpu_custom_call.1} parent=1 // loop_body
      %s23 = ssub.s32 %s18, 1
      %s24 = ssub.s32 %s18, 2
      %s37 = sadd.s32 1, %s28
      %p38 = scmp.ge.s32.totalorder %s37, 1
      %s39 = scalar_select %p38, 0, %s37
      %s40 = sadd.s32 1, %s27
      %s41 = scalar_select %p38, %s40, %s27
      %p42 = scmp.ge.s32.totalorder %s41, 1
      %s43 = scalar_select %p42, 0, %s41
      %s44 = sadd.s32 1, %s26
      %s45 = scalar_select %p42, %s44, %s26
      %p46 = scmp.ge.s32.totalorder %s45, 1
      %s47 = scalar_select %p46, 0, %s45
      %s48 = sadd.s32 1, %s25
      %s49 = scalar_select %p46, %s48, %s25
      %p50 = scmp.ge.s32.totalorder %s49, 3
      %s51 = scalar_select %p50, 0, %s49
      %s52 = ssub.s32 %s25, %s51
      %s53 = ssub.s32 %s26, %s47
      %s54 = sor.u32 %s52, %s53
      %s55 = ssub.s32 %s28, %s39
      %s56 = sor.u32 %s54, %s55
      %p57 = scmp.eq.s32.totalorder %s56, 0
      %s59 = sadd.s32 %s58, 1
      %s60 = scalar_select %p57, %s58, %s59
      %p63 = pneg %p57
      %p64 = scmp.eq.s32.totalorder %s18, 2
      %p65 = por %p63, %p64
      %p66 = scmp.ne.s32.totalorder %s58, %s61
      %p67 = scmp.eq.s32.totalorder %s18, 0
      %p68 = por %p66, %p67
      %p69 = scmp.ne.s32.totalorder %s58, %s61
      %p70 = scmp.eq.s32.totalorder %s23, 2
      %p71 = por %p69, %p70
      %p72 = scmp.ne.s32.totalorder %s61, %s62
      %p73 = scmp.eq.s32.totalorder %s23, 0
      %p74 = por %p72, %p73
      %p75 = scmp.ne.s32.totalorder %s61, %s62
      %p76 = scmp.eq.s32.totalorder %s24, 2
      %p77 = por %p75, %p76
      %p79 = scmp.ne.s32.totalorder %s62, %s78
      %p80 = scmp.eq.s32.totalorder %s24, 0
      %p81 = por %p79, %p80
      %s82 = ssub.s32 %s25, %s51
      %s83 = ssub.s32 %s28, %s39
      %s84 = sor.u32 %s82, %s83
      %s85 = ssub.s32 %s27, %s43
      %s86 = sor.u32 %s84, %s85
      %p87 = scmp.eq.s32.totalorder %s86, 0
      %s89 = sadd.s32 %s88, 1
      %s90 = scalar_select %p87, %s88, %s89
      %p93 = pneg %p87
      %p94 = scmp.eq.s32.totalorder %s18, 2
      %p95 = por %p93, %p94
      %p96 = scmp.ne.s32.totalorder %s88, %s91
      %p97 = scmp.eq.s32.totalorder %s18, 0
      %p98 = por %p96, %p97
      %p99 = scmp.ne.s32.totalorder %s88, %s91
      %p100 = scmp.eq.s32.totalorder %s23, 2
      %p101 = por %p99, %p100
      %p102 = scmp.ne.s32.totalorder %s91, %s92
      %p103 = scmp.eq.s32.totalorder %s23, 0
      %p104 = por %p102, %p103
      %p105 = scmp.ne.s32.totalorder %s91, %s92
      %p106 = scmp.eq.s32.totalorder %s24, 2
      %p107 = por %p105, %p106
      %p109 = scmp.ne.s32.totalorder %s92, %s108
      %p110 = scmp.eq.s32.totalorder %s24, 0
      %p111 = por %p109, %p110
      %s112 = ssub.s32 %s25, %s51
      %s113 = ssub.s32 %s27, %s43
      %s114 = sor.u32 %s112, %s113
      %p115 = scmp.eq.s32.totalorder %s114, 0
      %s117 = sadd.s32 %s116, 1
      %s118 = scalar_select %p115, %s116, %s117
      %p121 = pneg %p115
      %p122 = scmp.eq.s32.totalorder %s18, 2
      %p123 = por %p121, %p122
      %p124 = scmp.ne.s32.totalorder %s116, %s119
      %p125 = scmp.eq.s32.totalorder %s18, 0
      %p126 = por %p124, %p125
      %p127 = scmp.ne.s32.totalorder %s116, %s119
      %p128 = scmp.eq.s32.totalorder %s23, 2
      %p129 = por %p127, %p128
      %p130 = scmp.ne.s32.totalorder %s119, %s120
      %p131 = scmp.eq.s32.totalorder %s23, 0
      %p132 = por %p130, %p131
      %p133 = scmp.ne.s32.totalorder %s119, %s120
      %p134 = scmp.eq.s32.totalorder %s24, 2
      %p135 = por %p133, %p134
      %p137 = scmp.ne.s32.totalorder %s120, %s136
      %p138 = scmp.eq.s32.totalorder %s24, 0
      %p139 = por %p137, %p138
      %s140 = ssub.s32 %s25, %s51
      %s141 = ssub.s32 %s26, %s47
      %s142 = sor.u32 %s140, %s141
      %s143 = ssub.s32 %s27, %s43
      %s144 = sor.u32 %s142, %s143
      %p145 = scmp.eq.s32.totalorder %s144, 0
      %s147 = sadd.s32 %s146, 1
      %s148 = scalar_select %p145, %s146, %s147
      %p151 = pneg %p145
      %p152 = scmp.eq.s32.totalorder %s18, 2
      %p153 = por %p151, %p152
      %p154 = scmp.ne.s32.totalorder %s146, %s149
      %p155 = scmp.eq.s32.totalorder %s18, 0
      %p156 = por %p154, %p155
      %p157 = scmp.ne.s32.totalorder %s146, %s149
      %p158 = scmp.eq.s32.totalorder %s23, 2
      %p159 = por %p157, %p158
      %p160 = scmp.ne.s32.totalorder %s149, %s150
      %p161 = scmp.eq.s32.totalorder %s23, 0
      %p162 = por %p160, %p161
      %p163 = scmp.ne.s32.totalorder %s149, %s150
      %p164 = scmp.eq.s32.totalorder %s24, 2
      %p165 = por %p163, %p164
      %p167 = scmp.ne.s32.totalorder %s150, %s166
      %p168 = scmp.eq.s32.totalorder %s24, 0
      %p169 = por %p167, %p168
      %p170 = scmp.le.s32.totalorder 1, %s18
      %p171 = scmp.lt.s32.totalorder %s18, 4
      %p172 = pnand %p170, %p171
      %p173 = pneg %p172
      // Predicated region
      $region9: #{tpu_custom_call.1} parent=5 // pred_check
        _
      $region10: #{tpu_custom_call.1} parent=5 // pred_check_branch
        %175 = sbr.rel (%p172) target = $region12
      $region11: #{tpu_custom_call.1} parent=5 // pred_region
        %s176 = ssub.s32 %s18, 1
      $region12: #{tpu_custom_call.1} parent=5 // pred_fallthru
        _
      %p177 = scmp.lt.s32.totalorder %s18, 3
      // Predicated region
      $region13: #{tpu_custom_call.1} parent=5 // pred_check
        %p178 = pneg %p177
      $region14: #{tpu_custom_call.1} parent=5 // pred_check_branch
        %180 = sbr.rel (%p178) target = $region16
      $region15: #{tpu_custom_call.1} parent=5 // pred_region
        // Predicated region
        $region17: #{tpu_custom_call.1} parent=15 // pred_check
          %p181 = pneg %p68
        $region18: #{tpu_custom_call.1} parent=15 // pred_check_branch
          %183 = sbr.rel (%p181) target = $region20
        $region19: #{tpu_custom_call.1} parent=15 // pred_region
          %s184 = sand.u32 %s58, 1
          %s185 = scalar_lea.sflag [#allocation4], %s184
          %s186 = sand.u32 %s58, 1
          %s187 = smul.addr %s186, 16
          %s188 = scalar_lea.vmem [#allocation3], %s187
          %s189 = smul.u32 4, %s26
          %s191 = ssub.s32 256, 256
          %192 = vsyncadd %s185, %s191
          %s193 = sadd.s32 %s28, %s189
          %s194 = smul.addr %s25, 4
          %s195 = sadd.s32 %s193, %s194
          %s196 = smul.addr %s195, 64
          %s197 = scalar_lea.hbm %s0, %s196
          %s198 = sshll.u32 %s188, 4
          %s199 = int_to_ptr.vmem [resolvable:$true] %s198
          %204 = dma.hbm_to_vmem [thread:$0]  %s197, 256, %s199, %s185, 64, 64, 4
        $region20: #{tpu_custom_call.1} parent=15 // pred_fallthru
          _
        // Predicated region
        $region21: #{tpu_custom_call.1} parent=15 // pred_check
          %p205 = pneg %p98
        $region22: #{tpu_custom_call.1} parent=15 // pred_check_branch
          %207 = sbr.rel (%p205) target = $region24
        $region23: #{tpu_custom_call.1} parent=15 // pred_region
          %s208 = sand.u32 %s88, 1
          %s209 = scalar_lea.sflag [#allocation7], %s208
          %s210 = sand.u32 %s88, 1
          %s211 = smul.addr %s210, 64
          %s212 = scalar_lea.vmem [#allocation6], %s211
          %s213 = smul.u32 16, %s28
          %s215 = ssub.s32 1024, 1024
          %216 = vsyncadd %s209, %s215
          %s217 = sadd.s32 %s27, %s213
          %s218 = smul.addr %s25, 16
          %s219 = sadd.s32 %s217, %s218
          %s220 = smul.addr %s219, 64
          %s221 = scalar_lea.hbm %s1, %s220
          %s222 = sshll.u32 %s212, 4
          %s223 = int_to_ptr.vmem [resolvable:$true] %s222
          %228 = dma.hbm_to_vmem [thread:$0]  %s221, 1024, %s223, %s209, 64, 64, 4
        $region24: #{tpu_custom_call.1} parent=15 // pred_fallthru
          _
        // Predicated region
        $region25: #{tpu_custom_call.1} parent=15 // pred_check
          %p229 = pneg %p126
        $region26: #{tpu_custom_call.1} parent=15 // pred_check_branch
          %231 = sbr.rel (%p229) target = $region28
        $region27: #{tpu_custom_call.1} parent=15 // pred_region
          %p232 = scmp.lt.s32.totalorder %s25, 2
          %s233 = scalar_select %p232, %s25, 2
          %p234 = scmp.lt.s32.totalorder %s27, 0
          %s235 = scalar_select %p234, %s27, 0
          %s236 = sadd.s32 %s235, %s233
          %s237 = scalar_lea.vmem %s2, %s236
        $region28: #{tpu_custom_call.1} parent=15 // pred_fallthru
          _
      $region16: #{tpu_custom_call.1} parent=5 // pred_fallthru
        _
      %p238 = scmp.le.s32.totalorder 1, %s18
      %p239 = scmp.lt.s32.totalorder %s18, 4
      %p240 = pnand %p238, %p239
      %p241 = pneg %p240
      // Predicated region
      $region29: #{tpu_custom_call.1} parent=5 // pred_check
        _
      $region30: #{tpu_custom_call.1} parent=5 // pred_check_branch
        %243 = sbr.rel (%p240) target = $region32
      $region31: #{tpu_custom_call.1} parent=5 // pred_region
        %s244 = ssub.s32 %s18, 1
        %s245 = sand.u32 %s61, 1
        %s246 = scalar_lea.sflag [#allocation4], %s245
        %s247 = sand.u32 %s61, 1
        %s248 = smul.addr %s247, 16
        %s249 = scalar_lea.vmem [#allocation3], %s248
        // Predicated region
        $region33: #{tpu_custom_call.1} parent=31 // pred_check
          %p250 = pneg %p74
        $region34: #{tpu_custom_call.1} parent=31 // pred_check_branch
          %252 = sbr.rel (%p250) target = $region36
        $region35: #{tpu_custom_call.1} parent=31 // pred_region
          %253 = dma.done %s246, 256
        $region36: #{tpu_custom_call.1} parent=31 // pred_fallthru
          _
        %s254 = sand.u32 %s91, 1
        %s255 = scalar_lea.sflag [#allocation7], %s254
        %s256 = sand.u32 %s91, 1
        %s257 = smul.addr %s256, 64
        %s258 = scalar_lea.vmem [#allocation6], %s257
        // Predicated region
        $region37: #{tpu_custom_call.1} parent=31 // pred_check
          %p259 = pneg %p104
        $region38: #{tpu_custom_call.1} parent=31 // pred_check_branch
          %261 = sbr.rel (%p259) target = $region40
        $region39: #{tpu_custom_call.1} parent=31 // pred_region
          %262 = dma.done %s255, 1024
        $region40: #{tpu_custom_call.1} parent=31 // pred_fallthru
          _
        %s263 = sand.u32 %s61, 1
        %s264 = scalar_lea.sflag [#allocation4], %s263
        %s265 = sand.u32 %s61, 1
        %s266 = smul.addr %s265, 16
        %s267 = scalar_lea.vmem [#allocation3], %s266
        %p268 = pneg %p74
        %p269 = pneg %p71
        %s270 = sand.u32 %s91, 1
        %s271 = scalar_lea.sflag [#allocation7], %s270
        %s272 = sand.u32 %s91, 1
        %s273 = smul.addr %s272, 64
        %s274 = scalar_lea.vmem [#allocation6], %s273
        %p275 = pneg %p104
        %p276 = pneg %p101
        %p277 = scmp.lt.s32.totalorder %s29, 2
        %s278 = scalar_select %p277, %s29, 2
        %p279 = scmp.lt.s32.totalorder %s31, 0
        %s280 = scalar_select %p279, %s31, 0
        %s281 = sadd.s32 %s280, %s278
        %s282 = scalar_lea.vmem %s2, %s281
        %p283 = pneg %p132
        %p284 = pneg %p129
        %p285 = pneg %p162
        %p286 = pneg %p159
        %s287 = sand.u32 %s149, 1
        %s288 = scalar_lea.sflag [#allocation5], %s287
        %s289 = sand.u32 %s149, 1
        %s290 = smul.addr %s289, 16
        %s291 = scalar_lea.vmem [#allocation8], %s290
        %s292 = smul.u32 4, %s30
        %s293 = smul.u32 16, %s32
        %p294 = scmp.lt.s32.totalorder %s29, 2
        %s295 = scalar_select %p294, %s29, 2
        %p296 = scmp.lt.s32.totalorder %s31, 0
        %s297 = scalar_select %p296, %s31, 0
        %s298 = sadd.s32 %s297, %s295
        %s299 = scalar_lea.vmem %s2, %s298
        %s300 = smul.u32 4, %s30
        %p302 = scmp.eq.s32.totalorder %s32, 0
        // Predicated region
        $region41: #{tpu_custom_call.1} parent=31 // pred_check
          %p303 = pneg %p302
        $region42: #{tpu_custom_call.1} parent=31 // pred_check_branch
          %305 = sbr.rel (%p303) target = $region44
        $region43: #{tpu_custom_call.1} parent=31 // pred_region
          %306 = vst [vmem:[#allocation2] sm:$0xff] 0.0
          %307 = vst [vmem:[#allocation2 + $0x8] sm:$0xff] 0.0
          %308 = vst [vmem:[#allocation2 + $0x10] sm:$0xff] 0.0
          %309 = vst [vmem:[#allocation2 + $0x18] sm:$0xff] 0.0
        $region44: #{tpu_custom_call.1} parent=31 // pred_fallthru
          _
        %v310 = vld [vmem:[#allocation2] sm:$0xff]
        %v311 = vld [vmem:[#allocation2 + $0x8] sm:$0xff]
        %v312 = vld [vmem:[#allocation2 + $0x10] sm:$0xff]
        %v313 = vld [vmem:[#allocation2 + $0x18] sm:$0xff]
        %v314 = vld [vmem:[%s249] sm:$0xf]
        %v315 = vld [vmem:[%s249 + $0x4] sm:$0xf]
        %v316 = vld [vmem:[%s249 + $0x8] sm:$0xf]
        %v317 = vld [vmem:[%s249 + $0xc] sm:$0xf]
        %v318 = vld [vmem:[%s258] sm:$0xf]
        %v319 = vld [vmem:[%s258 + $0x4] sm:$0xf]
        %v320 = vld [vmem:[%s258 + $0x8] sm:$0xf]
        %v321 = vld [vmem:[%s258 + $0xc] sm:$0xf]
        %v322 = vld [vmem:[%s258 + $0x10] sm:$0xf]
        %v323 = vld [vmem:[%s258 + $0x14] sm:$0xf]
        %v324 = vld [vmem:[%s258 + $0x18] sm:$0xf]
        %v325 = vld [vmem:[%s258 + $0x1c] sm:$0xf]
        %v326 = vld [vmem:[%s258 + $0x20] sm:$0xf]
        %v327 = vld [vmem:[%s258 + $0x24] sm:$0xf]
        %v328 = vld [vmem:[%s258 + $0x28] sm:$0xf]
        %v329 = vld [vmem:[%s258 + $0x2c] sm:$0xf]
        %v330 = vld [vmem:[%s258 + $0x30] sm:$0xf]
        %v331 = vld [vmem:[%s258 + $0x34] sm:$0xf]
        %v332 = vld [vmem:[%s258 + $0x38] sm:$0xf]
        %v333 = vld [vmem:[%s258 + $0x3c] sm:$0xf]
        %v338 = vunpack.c.l.b16 %v314
        %v339 = vunpack.c.l.b16 %v315
        %v340 = vunpack.c.l.b16 %v316
        %v341 = vunpack.c.l.b16 %v317
        %v342 = vpack.c.b16 %v339, %v338
        %v343 = vpack.c.b16 %v341, %v340
        %v362 = vunpack.c.l.b16 %v318
        %v363 = vunpack.c.l.b16 %v319
        %v364 = vunpack.c.l.b16 %v320
        %v365 = vunpack.c.l.b16 %v321
        %v366 = vunpack.c.l.b16 %v322
        %v367 = vunpack.c.l.b16 %v323
        %v368 = vunpack.c.l.b16 %v324
        %v369 = vunpack.c.l.b16 %v325
        %v370 = vunpack.c.l.b16 %v326
        %v371 = vunpack.c.l.b16 %v327
        %v372 = vunpack.c.l.b16 %v328
        %v373 = vunpack.c.l.b16 %v329
        %v374 = vunpack.c.l.b16 %v330
        %v375 = vunpack.c.l.b16 %v331
        %v376 = vunpack.c.l.b16 %v332
        %v377 = vunpack.c.l.b16 %v333
        %v378 = vpack.c.b16 %v363, %v362
        %v379 = vpack.c.b16 %v365, %v364
        %v380 = vpack.c.b16 %v367, %v366
        %v381 = vpack.c.b16 %v369, %v368
        %v382 = vpack.c.b16 %v371, %v370
        %v383 = vpack.c.b16 %v373, %v372
        %v384 = vpack.c.b16 %v375, %v374
        %v385 = vpack.c.b16 %v377, %v376
        %394 = vmatprep.subr.bf16.mxu0 0
        %395 = vmatpush1.bf16.msra.mxu0 %v378
        %396 = vmatprep.subr.bf16.mxu0 0
        %397 = vmatpush1.bf16.msra.mxu0 %v379
        %398 = vmatprep.subr.bf16.mxu0 0
        %399 = vmatpush1.bf16.msra.mxu0 %v380
        %400 = vmatprep.subr.bf16.mxu0 0
        %401 = vmatpush1.bf16.msra.mxu0 %v381
        %402 = vmatprep.subr.bf16.mxu0 0
        %403 = vmatpush1.bf16.msra.mxu0 %v382
        %404 = vmatprep.subr.bf16.mxu0 0
        %405 = vmatpush1.bf16.msra.mxu0 %v383
        %406 = vmatprep.subr.bf16.mxu0 0
        %407 = vmatpush1.bf16.msra.mxu0 %v384
        %408 = vmatprep.subr.bf16.mxu0 0
        %409 = vmatpush1.bf16.msra.mxu0 %v385
        %410 = vmatprep.subr.bf16.mxu0 0
        %411 = vmatpush1.bf16.msra.mxu0 0
        %412 = vmatprep.subr.bf16.mxu0 0
        %413 = vmatpush1.bf16.msra.mxu0 0
        %414 = vmatprep.subr.bf16.mxu0 0
        %415 = vmatpush1.bf16.msra.mxu0 0
        %416 = vmatprep.subr.bf16.mxu0 0
        %417 = vmatpush1.bf16.msra.mxu0 0
        %418 = vmatprep.subr.bf16.mxu0 0
        %419 = vmatpush1.bf16.msra.mxu0 0
        %420 = vmatprep.subr.bf16.mxu0 0
        %421 = vmatpush1.bf16.msra.mxu0 0
        %422 = vmatprep.subr.bf16.mxu0 0
        %423 = vmatpush1.bf16.msra.mxu0 0
        %424 = vmatprep.subr.bf16.mxu0 0
        %425 = vmatpush1.bf16.msra.mxu0 0
        %426 = vmatprep.mubr.bf16.mxu0 0
        %427 = vmatmul.mubr.bf16.gmra.mrb[0].mxu0 %v342
        %v428 = vpop.f32.mrb[0].mxu0
        %v429 = vadd.f32 0.0, %v428
        %v430 = vpop.f32.mrb[0].mxu0
        %v431 = vpop.f32.mrb[0].mxu0
        %v432 = vadd.f32 0.0, %v431
        %v433 = vpop.f32.mrb[0].mxu0
        %434 = vmatprep.mubr.bf16.mxu0 0
        %435 = vmatmul.mubr.bf16.gmra.mrb[0].mxu0 %v343
        %v436 = vpop.f32.mrb[0].mxu0
        %v437 = vadd.f32 0.0, %v436
        %v438 = vpop.f32.mrb[0].mxu0
        %v439 = vpop.f32.mrb[0].mxu0
        %v440 = vadd.f32 0.0, %v439
        %v441 = vpop.f32.mrb[0].mxu0
        %442 = vdwg.mxu0
        %v443 = vadd.f32 %v310, %v429
        %v444 = vadd.f32 %v311, %v432
        %v445 = vadd.f32 %v312, %v437
        %v446 = vadd.f32 %v313, %v440
        %447 = vst [vmem:[#allocation2] sm:$0xff] %v443
        %448 = vst [vmem:[#allocation2 + $0x8] sm:$0xff] %v444
        %449 = vst [vmem:[#allocation2 + $0x10] sm:$0xff] %v445
        %450 = vst [vmem:[#allocation2 + $0x18] sm:$0xff] %v446
        // Predicated region
        $region45: #{tpu_custom_call.1} parent=31 // pred_check
          %p451 = pneg %p302
        $region46: #{tpu_custom_call.1} parent=31 // pred_check_branch
          %453 = sbr.rel (%p451) target = $region48
        $region47: #{tpu_custom_call.1} parent=31 // pred_region
          %v454 = vld [vmem:[#allocation2] sm:$0xff]
          %v455 = vld [vmem:[#allocation2 + $0x8] sm:$0xff]
          %v456 = vld [vmem:[#allocation2 + $0x10] sm:$0xff]
          %v457 = vld [vmem:[#allocation2 + $0x18] sm:$0xff]
          %v458 = vld [vmem:[%s299] sm:$0x1]
          %v460 = vlaneseq
          %v461 = vshrl.u32 %v460, 7
          %v462 = vsub.s32 0, %v461
          %v463 = vrot.slane %v458, %v462
          %v465 = vadd.f32 %v454, %v463
          %v466 = vadd.f32 %v455, %v463
          %v467 = vadd.f32 %v456, %v463
          %v468 = vadd.f32 %v457, %v463
          %v469 = vpack.c.bf16 %v466, %v465
          %v470 = vpack.c.bf16 %v468, %v467
          %v473 = vunpack.c.l.b16 %v469
          %v474 = vunpack.c.h.b16 %v469
          %v475 = vunpack.c.l.b16 %v470
          %v476 = vunpack.c.h.b16 %v470
          %v477 = vpack.c.b16 %v473, %v473
          %v478 = vpack.c.b16 %v474, %v474
          %v479 = vpack.c.b16 %v475, %v475
          %v480 = vpack.c.b16 %v476, %v476
          %485 = vst [vmem:[%s291] sm:$0xf] %v477
          %486 = vst [vmem:[%s291 + $0x4] sm:$0xf] %v478
          %487 = vst [vmem:[%s291 + $0x8] sm:$0xf] %v479
          %488 = vst [vmem:[%s291 + $0xc] sm:$0xf] %v480
        $region48: #{tpu_custom_call.1} parent=31 // pred_fallthru
          _
        %s489 = sand.u32 %s149, 1
        %s490 = scalar_lea.sflag [#allocation5], %s489
        %s491 = sand.u32 %s149, 1
        %s492 = smul.addr %s491, 16
        %s493 = scalar_lea.vmem [#allocation8], %s492
        // Predicated region
        $region49: #{tpu_custom_call.1} parent=31 // pred_check
          %p494 = pneg %p159
        $region50: #{tpu_custom_call.1} parent=31 // pred_check_branch
          %496 = sbr.rel (%p494) target = $region52
        $region51: #{tpu_custom_call.1} parent=31 // pred_region
          %s497 = smul.u32 4, %s30
          %s499 = ssub.s32 256, 256
          %500 = vsyncadd %s490, %s499
          %s501 = sadd.s32 %s31, %s497
          %s502 = smul.addr %s29, 4
          %s503 = sadd.s32 %s501, %s502
          %s504 = smul.addr %s503, 64
          %s505 = scalar_lea.hbm %s3, %s504
          %s506 = sshll.u32 %s493, 4
          %s507 = int_to_ptr.vmem [resolvable:$true] %s506
          %512 = dma.vmem_to_hbm [thread:$0]  %s507, 256, %s505, %s490, 64, 64, 4
        $region52: #{tpu_custom_call.1} parent=31 // pred_fallthru
          _
      $region32: #{tpu_custom_call.1} parent=5 // pred_fallthru
        _
      %p513 = scmp.le.s32.totalorder 2, %s18
      // Predicated region
      $region53: #{tpu_custom_call.1} parent=5 // pred_check
        %p514 = pneg %p513
      $region54: #{tpu_custom_call.1} parent=5 // pred_check_branch
        %516 = sbr.rel (%p514) target = $region56
      $region55: #{tpu_custom_call.1} parent=5 // pred_region
        %s517 = ssub.s32 %s18, 2
        // Predicated region
        $region57: #{tpu_custom_call.1} parent=55 // pred_check
          %p518 = pneg %p165
        $region58: #{tpu_custom_call.1} parent=55 // pred_check_branch
          %520 = sbr.rel (%p518) target = $region60
        $region59: #{tpu_custom_call.1} parent=55 // pred_region
          %s521 = sand.u32 %s150, 1
          %s522 = scalar_lea.sflag [#allocation5], %s521
          %s523 = sand.u32 %s150, 1
          %s524 = smul.addr %s523, 16
          %s525 = scalar_lea.vmem [#allocation8], %s524
          %526 = dma.done %s522, 256
        $region60: #{tpu_custom_call.1} parent=55 // pred_fallthru
          _
      $region56: #{tpu_custom_call.1} parent=5 // pred_fallthru
        _
    $region6: #{tpu_custom_call.1} parent=1 // loop_footer
      %s22 = sadd.s32 1, %s18
    $region7: #{tpu_custom_call.1} parent=1 // loop_footer_branch
      %17 = sbr.rel target = $region3
    $region8: #{tpu_custom_call.1} parent=1 // loop_exit
      _
    %527 = vsyncpa [#allocation4], 1
    %s528 = scalar_lea.sflag [#allocation4], 1
    %529 = vsyncpa %s528, 1
    %530 = vsyncpa [#allocation7], 1
    %s531 = scalar_lea.sflag [#allocation7], 1
    %532 = vsyncpa %s531, 1
    %533 = vsyncpa [#allocation5], 1
    %s534 = scalar_lea.sflag [#allocation5], 1
    %535 = vsyncpa %s534, 1

</llo_original>
